<compile_context>
chip_gen: v7x
topology: tpu7x:2x2x1
jax: 0.10.0
libtpu: 0.0.40
codegen_flags: <defaults>
</compile_context>

<pallas_src>
import numpy as np
import jax
import jax.numpy as jnp
from jax import lax
from jax.experimental import pallas as pl
from jax.experimental.pallas import tpu as pltpu


def _timestep_embed_kernel(ts_ref, sel_ref, out_ref):
    # ts_ref:  (TR, k)    float32 -- k packed timesteps per output row
    # sel_ref: (k, k*D)   float32 -- block-diagonal selector; row g holds freq_col[j % D]
    #                                on columns [g*D, (g+1)*D), zeros elsewhere
    # out_ref: (TR, k*D)  float32 -- k packed sinusoidal embedding rows
    TR, D_out = out_ref.shape
    k = ts_ref.shape[1]

    t = ts_ref[...]                                   # (TR, k)
    sel = sel_ref[...]                                # (k, D_out)

    # angle[r, j] = t[r, j // D] * freq_col[j % D], built with k exact f32 mul-adds
    # (off-block terms are exact zeros, so the sum is bitwise the plain product).
    angle = t[:, 0:1] * sel[0:1, :]                   # (TR, 1) * (1, D_out) -> (TR, D_out)
    for g in range(1, k):                             # tiny static unroll (k <= 64; 4 for D=32)
        angle = angle + t[:, g:g + 1] * sel[g:g + 1, :]

    # even columns -> sin, odd columns -> cos (d_model even => global parity == local parity)
    j = lax.broadcasted_iota(jnp.int32, (TR, D_out), dimension=1)
    is_even = (j & 1) == 0
    out_ref[...] = jnp.where(is_even, jnp.sin(angle), jnp.cos(angle))


def timestep_embedding(timesteps, d_model, max_len=5000, *, max_rows_per_tile=1024):
    """Pallas equivalent of TimestepEmbeding(d_model, max_len).forward(timesteps).

    timesteps: int array (any shape; typically (B,)) with values in [0, max_len)
    returns:   float32 array of shape timesteps.shape + (1, d_model)
    """
    assert d_model % 2 == 0, "d_model must be even (matches PyTorch module)"
    del max_len  # the table is never materialized; the formula is evaluated directly

    orig_shape = tuple(timesteps.shape)
    ts_flat = jnp.asarray(timesteps).reshape(-1).astype(jnp.float32)   # exact for t < 2^24
    B = int(ts_flat.shape[0])

    # Lane-packing factor: make the output last dim exactly 128 lanes when possible.
    if d_model < 128 and 128 % d_model == 0:
        k = 128 // d_model
    else:
        k = 1
    D_out = k * d_model

    # Row tiling: sublane-align (multiple of 8) and cap rows per tile.
    # 1024 rows * 128 lanes * 4 B = 512 KiB per output tile -> comfortable even on v7x VMEM.
    rows_needed = pl.cdiv(B, k)
    rows_aligned = max(8, ((rows_needed + 7) // 8) * 8)
    TR = min(rows_aligned, max_rows_per_tile)          # multiple of 8
    num_tiles = pl.cdiv(rows_aligned, TR)
    R = num_tiles * TR
    B_pad = R * k

    ts_pad = jnp.pad(ts_flat, (0, B_pad - B))           # padded timesteps = 0 (discarded below)
    ts2 = ts_pad.reshape(R, k)

    # Frequency constants, computed exactly like the PyTorch div_term.
    inv_freq = jnp.exp(jnp.arange(0, d_model, 2, dtype=jnp.float32)
                       * jnp.float32(-np.log(10000.0) / d_model))        # (d_model//2,)
    freq_col = jnp.repeat(inv_freq, 2)                                   # (d_model,) [f0,f0,f1,f1,..]
    # Block-diagonal selector folding in the frequency: sel[g, g*D + d] = freq_col[d], else 0.
    eye = jnp.eye(k, dtype=jnp.float32)                                  # (k, k)
    sel = (eye[:, :, None] * freq_col[None, None, :]).reshape(k, D_out)  # (k, k*d_model)

    out2d = pl.pallas_call(
        _timestep_embed_kernel,
        out_shape=jax.ShapeDtypeStruct((R, D_out), jnp.float32),
        grid=(num_tiles,),
        in_specs=[
            pl.BlockSpec((TR, k), lambda i: (i, 0)),
            pl.BlockSpec((k, D_out), lambda i: (0, 0)),
        ],
        out_specs=pl.BlockSpec((TR, D_out), lambda i: (i, 0)),
        compiler_params=pltpu.CompilerParams(
            dimension_semantics=("parallel",)),
    )(ts2, sel)

    # (R, k*D) is row-major identical to (R*k, D); drop padded rows and restore shape.
    emb = out2d.reshape(B_pad, d_model)[:B]
    return emb.reshape(orig_shape + (1, d_model))


def _reference(timesteps, d_model, max_len=5000):
    """Pure-JAX reference that literally builds pe and gathers, like PyTorch."""
    position = jnp.arange(0, max_len, dtype=jnp.float32)[:, None]          # (L,1)
    div_term = jnp.exp(jnp.arange(0, d_model, 2, dtype=jnp.float32)
                       * (-np.log(10000.0) / d_model))                     # (D/2,)
    pe = jnp.zeros((max_len, d_model), jnp.float32)
    pe = pe.at[:, 0::2].set(jnp.sin(position * div_term))
    pe = pe.at[:, 1::2].set(jnp.cos(position * div_term))
    pe = pe[:, None, :]                                                    # (L,1,D)
    return pe[timesteps]                                                   # (...,1,D)


if __name__ == "__main__":
    max_len = 5000
    key = jax.random.PRNGKey(0)

    # Primary test: small shape consistent with the module (lane-packed path, k=4).
    d_model = 32
    B = 8
    timesteps = jax.random.randint(key, (B,), 0, max_len, dtype=jnp.int32)

    out = timestep_embedding(timesteps, d_model, max_len)
    out = jax.block_until_ready(out)
    assert out.shape == (B, 1, d_model), out.shape
    ref = _reference(timesteps, d_model, max_len)
    np.testing.assert_allclose(np.asarray(out), np.asarray(ref), rtol=1e-5, atol=1e-5)

    # Secondary test: non-divisible batch (padding path), same d_model.
    B2 = 10
    ts2 = jax.random.randint(jax.random.PRNGKey(1), (B2,), 0, max_len, dtype=jnp.int32)
    out2 = jax.block_until_ready(timestep_embedding(ts2, d_model, max_len))
    np.testing.assert_allclose(np.asarray(out2),
                               np.asarray(_reference(ts2, d_model, max_len)),
                               rtol=1e-5, atol=1e-5)

    # Secondary test: d_model = 128 (no packing, k=1 path).
    d_model3 = 128
    out3 = jax.block_until_ready(timestep_embedding(timesteps, d_model3, max_len))
    np.testing.assert_allclose(np.asarray(out3),
                               np.asarray(_reference(timesteps, d_model3, max_len)),
                               rtol=1e-5, atol=1e-5)

    print("KERNEL_OK")
</pallas_src>

<mosaic_0001>
module attributes {stable_mosaic.version = 11 : i64} {
  func.func @_timestep_embed_kernel(%arg0: i32, %arg1: memref<8x4xf32, #tpu.memory_space<vmem>>, %arg2: memref<4x128xf32, #tpu.memory_space<vmem>>, %arg3: memref<8x128xf32, #tpu.memory_space<vmem>>) attributes {dimension_semantics = [#tpu.dimension_semantics<parallel>], iteration_bounds = array<i64: 1>, scalar_prefetch = 0 : i64, scratch_operands = 0 : i64, tpu.core_type = #tpu.core_type<tc>, window_params = [{transform_indices = @transform_0, window_bounds = array<i64: 8, 4>}, {pipeline_mode = #tpu.pipeline_mode<synchronous>, transform_indices = @transform_1, window_bounds = array<i64: 4, 128>}, {transform_indices = @transform_2, window_bounds = array<i64: 8, 128>}]} {
    %c0 = arith.constant 0 : index
    %c0_0 = arith.constant 0 : index
    %0 = vector.load %arg1[%c0, %c0_0] : memref<8x4xf32, #tpu.memory_space<vmem>>, vector<8x4xf32>
    %c0_1 = arith.constant 0 : index
    %c0_2 = arith.constant 0 : index
    %1 = vector.load %arg2[%c0_1, %c0_2] : memref<4x128xf32, #tpu.memory_space<vmem>>, vector<4x128xf32>
    %2 = vector.extract_strided_slice %0 {offsets = [0, 0], sizes = [8, 1], strides = [1, 1]} : vector<8x4xf32> to vector<8x1xf32>
    %3 = vector.extract_strided_slice %1 {offsets = [0, 0], sizes = [1, 128], strides = [1, 1]} : vector<4x128xf32> to vector<1x128xf32>
    %4 = vector.broadcast %2 : vector<8x1xf32> to vector<8x128xf32>
    %5 = vector.broadcast %3 : vector<1x128xf32> to vector<8x128xf32>
    %6 = arith.mulf %4, %5 : vector<8x128xf32>
    %7 = vector.extract_strided_slice %0 {offsets = [0, 1], sizes = [8, 1], strides = [1, 1]} : vector<8x4xf32> to vector<8x1xf32>
    %8 = vector.extract_strided_slice %1 {offsets = [1, 0], sizes = [1, 128], strides = [1, 1]} : vector<4x128xf32> to vector<1x128xf32>
    %9 = vector.broadcast %7 : vector<8x1xf32> to vector<8x128xf32>
    %10 = vector.broadcast %8 : vector<1x128xf32> to vector<8x128xf32>
    %11 = arith.mulf %9, %10 : vector<8x128xf32>
    %12 = arith.addf %6, %11 : vector<8x128xf32>
    %13 = vector.extract_strided_slice %0 {offsets = [0, 2], sizes = [8, 1], strides = [1, 1]} : vector<8x4xf32> to vector<8x1xf32>
    %14 = vector.extract_strided_slice %1 {offsets = [2, 0], sizes = [1, 128], strides = [1, 1]} : vector<4x128xf32> to vector<1x128xf32>
    %15 = vector.broadcast %13 : vector<8x1xf32> to vector<8x128xf32>
    %16 = vector.broadcast %14 : vector<1x128xf32> to vector<8x128xf32>
    %17 = arith.mulf %15, %16 : vector<8x128xf32>
    %18 = arith.addf %12, %17 : vector<8x128xf32>
    %19 = vector.extract_strided_slice %0 {offsets = [0, 3], sizes = [8, 1], strides = [1, 1]} : vector<8x4xf32> to vector<8x1xf32>
    %20 = vector.extract_strided_slice %1 {offsets = [3, 0], sizes = [1, 128], strides = [1, 1]} : vector<4x128xf32> to vector<1x128xf32>
    %21 = vector.broadcast %19 : vector<8x1xf32> to vector<8x128xf32>
    %22 = vector.broadcast %20 : vector<1x128xf32> to vector<8x128xf32>
    %23 = arith.mulf %21, %22 : vector<8x128xf32>
    %24 = arith.addf %18, %23 : vector<8x128xf32>
    %25 = tpu.iota {dimensions = array<i32: 1>} : vector<8x128xi32>
    %c1_i32 = arith.constant 1 : i32
    %26 = vector.broadcast %c1_i32 : i32 to vector<8x128xi32>
    %27 = arith.andi %25, %26 : vector<8x128xi32>
    %c0_i32 = arith.constant 0 : i32
    %28 = vector.broadcast %c0_i32 : i32 to vector<8x128xi32>
    %29 = arith.cmpi eq, %27, %28 : vector<8x128xi32>
    %30 = math.sin %24 : vector<8x128xf32>
    %31 = math.cos %24 : vector<8x128xf32>
    %32 = arith.select %29, %30, %31 : vector<8x128xi1>, vector<8x128xf32>
    %c0_3 = arith.constant 0 : index
    %c0_4 = arith.constant 0 : index
    %33 = vector.load %arg3[%c0_3, %c0_4] : memref<8x128xf32, #tpu.memory_space<vmem>>, vector<8x128xf32>
    tpu.vector_store %arg3[%c0_3, %c0_4], %32 {strides = array<i32>} : memref<8x128xf32, #tpu.memory_space<vmem>>, vector<8x128xf32>,
    return
  }
  func.func @transform_0(%arg0: i32) -> (i32, i32) {
    %c0_i32 = arith.constant 0 : i32
    %c0_i32_0 = arith.constant 0 : i32
    return %arg0, %c0_i32 : i32, i32
  }
  func.func @transform_1(%arg0: i32) -> (i32, i32) {
    %c0_i32 = arith.constant 0 : i32
    %c0_i32_0 = arith.constant 0 : i32
    %c0_i32_1 = arith.constant 0 : i32
    return %c0_i32, %c0_i32_0 : i32, i32
  }
  func.func @transform_2(%arg0: i32) -> (i32, i32) {
    %c0_i32 = arith.constant 0 : i32
    %c0_i32_0 = arith.constant 0 : i32
    return %arg0, %c0_i32 : i32, i32
  }
}

</mosaic_0001>

<llo_original>
// kernel: tpu_custom_call.1
$region0: #{tpu_custom_call.1}
  #allocation0 [shape = 'u32[]', space=smem, size = 0x4, offset = 0x4, fixed_abs, tag = 'smem constant byte address 0x4 - core index']
  #allocation1 [shape = 'u32[144,128]{1,0:T(1,128)}', space=vmem, size = 0x12000, scoped, tag = 'internal scratch']
  %s0 = inlined_call_operand.vmem [shape: f32[8,4], index: 0, kind: input, shape index: {}]
  %s1 = inlined_call_operand.vmem [shape: f32[4,128], index: 1, kind: input, shape index: {}]
  %s2 = inlined_call_operand.hbm [shape: f32[8,128], index: 2, kind: output, shape index: {}]
  %s3 = sld [smem:[#allocation0]]
  $region18: #{tpu_custom_call.1} parent=0
    _
  %s5 = ssub.s32 1, %s3
  %s6 = scalar_select 0, %s5, %s3
  $region1: #{tpu_custom_call.1} parent=0
    #allocation2 [shape = 'u8[4096]{0}', space=vmem, size = 0x1000, scoped, tag = 'output window, operand 0, single buffered']
    #allocation3 [shape = 's32[1]{0}', space=sflag, size = 0x4, scoped, tag = 'scoped memory for tpu_custom_call.1']
    %7 = vsyncpa [#allocation3], 0
    // Predicated region
    $region2: #{tpu_custom_call.1} parent=1 // pred_check
      _
    $region3: #{tpu_custom_call.1} parent=1 // pred_check_branch
      %9 = sbr.rel (0) target = $region5
    $region4: #{tpu_custom_call.1} parent=1 // pred_region
      _
    $region5: #{tpu_custom_call.1} parent=1 // pred_fallthru
      _
    // Predicated region
    $region6: #{tpu_custom_call.1} parent=1 // pred_check
      _
    $region7: #{tpu_custom_call.1} parent=1 // pred_check_branch
      %11 = sbr.rel (0) target = $region9
    $region8: #{tpu_custom_call.1} parent=1 // pred_region
      _
    $region9: #{tpu_custom_call.1} parent=1 // pred_fallthru
      _
    %v12 = vld [vmem:[%s0] sm:$0xff]
    %v13 = vld [vmem:[%s1] sm:$0xf]
    %15 = vset.pattern.permute.xlu0 0
    %16 = vperm.xlu0 %15, %v12
    %v17 = vpop.permute.xlu0 %16
    %v19 = vlaneseq
    %v20 = vshrl.u32 %v19, 7
    %v21 = vsub.s32 0, %v20
    %v22 = vrot.slane %v13, %v21
    %v23 = vmul.f32 %v17, %v22
    %24 = vset.pattern.permute.xlu0 1
    %25 = vperm.xlu0 %24, %v12
    %v26 = vpop.permute.xlu0 %25
    %v28 = vlaneseq
    %v29 = vshrl.u32 %v28, 7
    %v30 = vsub.s32 1, %v29
    %v31 = vrot.slane %v13, %v30
    %v32 = vmul.f32 %v26, %v31
    %v33 = vadd.f32 %v23, %v32
    %34 = vset.pattern.permute.xlu0 2
    %35 = vperm.xlu0 %34, %v12
    %v36 = vpop.permute.xlu0 %35
    %v38 = vlaneseq
    %v39 = vshrl.u32 %v38, 7
    %v40 = vsub.s32 2, %v39
    %v41 = vrot.slane %v13, %v40
    %v42 = vmul.f32 %v36, %v41
    %v43 = vadd.f32 %v33, %v42
    %44 = vset.pattern.permute.xlu0 3
    %45 = vperm.xlu0 %44, %v12
    %v46 = vpop.permute.xlu0 %45
    %v48 = vlaneseq
    %v49 = vshrl.u32 %v48, 7
    %v50 = vsub.s32 3, %v49
    %v51 = vrot.slane %v13, %v50
    %v52 = vmul.f32 %v46, %v51
    %v53 = vadd.f32 %v43, %v52
    %v54 = vlaneseq
    %v55 = vand.u32 %v54, 127
    %v56 = vand.u32 %v55, 1
    %vm57 = vcmp.eq.s32.totalorder %v56, 0
    %v58 = vand.u32 2147483647, %v53
    %vm59 = vcmp.le.f32.partialorder %v58, 0.7853982
    %vm60 = vcmp.lt.s32.totalorder %v53, 0
    %v61 = vand.u32 %v53, 2139095040
    %v62 = vshrl.u32 %v61, 23
    %v63 = vsub.s32 %v62, 127
    %v64 = vand.u32 2147483647, %v53
    %v65 = vand.u32 %v64, 8388607
    %v66 = vor.u32 %v65, 8388608
    %v67 = vsub.s32 0, %v66
    %v68 = vadd.s32 %v63, 1
    %vm69 = vcmp.gt.s32.totalorder %v68, 0
    %v70 = vsel %vm69, %v68, 0
    %v71 = vshrl.u32 %v70, 5
    %v72 = vand.u32 %v70, 31
    %v73 = vsub.s32 32, %v72
    %v74 = vshrl.u32 683565275, %v73
    %v75 = vshll.u32 683565275, %v72
    %v76 = vshrl.u32 2475754826, %v73
    %v77 = vor.u32 %v75, %v76
    %v78 = vshll.u32 2475754826, %v72
    %v79 = vshrl.u32 2131351028, %v73
    %v80 = vor.u32 %v78, %v79
    %v81 = vshll.u32 2131351028, %v72
    %v82 = vshrl.u32 2102212464, %v73
    %v83 = vor.u32 %v81, %v82
    %v84 = vshll.u32 2102212464, %v72
    %v85 = vshrl.u32 920167782, %v73
    %v86 = vor.u32 %v84, %v85
    %v87 = vshll.u32 920167782, %v72
    %v88 = vshrl.u32 1326507024, %v73
    %v89 = vor.u32 %v87, %v88
    %vm90 = vcmp.lt.s32.totalorder %v71, 1
    %vm91 = vcmp.lt.s32.totalorder %v71, 2
    %vm92 = vcmp.lt.s32.totalorder %v71, 3
    %vm93 = vcmp.lt.s32.totalorder %v71, 4
    %v94 = vsel %vm90, %v74, %v77
    %v95 = vsel %vm93, %v83, 2102212464
    %v96 = vsel %vm92, %v80, %v95
    %v97 = vsel %vm91, %v94, %v96
    %v98 = vsel %vm90, %v77, %v80
    %v99 = vsel %vm93, %v86, 920167782
    %v100 = vsel %vm92, %v83, %v99
    %v101 = vsel %vm91, %v98, %v100
    %v102 = vsel %vm90, %v80, %v83
    %v103 = vsel %vm93, %v89, 1326507024
    %v104 = vsel %vm92, %v86, %v103
    %v105 = vsel %vm91, %v102, %v104
    %v106 = vshll.u32 %v66, 8
    %v107 = vmul.u32.u64.compose %v106, %v105
    %v108 = vextract.low.u32 %v107
    %v109 = vextract.high.u32 %v107
    %v110 = vmul.u32.u64.compose %v106, %v101
    %v111 = vextract.low.u32 %v110
    %v112 = vextract.high.u32 %v110
    %v113 = vmul.u32 %v106, %v97
    %v114 = vadd.s32 %v109, %v111
    %vm115 = vc.u32 %v109, %v111
    %v116 = vadd.s32 %v112, 1
    %v117 = vsel %vm115, %v116, %v112
    %v118 = vadd.s32 %v113, %v117
    %v119 = vadd.s32 %v118, 536870912
    %v120 = vshrl.u32 %v119, 30
    %v121 = vshll.u32 %v120, 30
    %v122 = vsub.s32 %v118, %v121
    %vm123 = vcmp.lt.s32.totalorder %v122, 0
    %v124 = vsub.s32 0, %v122
    %v125 = vsel %vm123, %v124, %v122
    %v126 = vclz %v125
    %v127 = vsub.s32 %v126, 2
    %vm128 = vcmp.gt.s32.totalorder 0, %v127
    %v129 = vsel %vm128, 0, %v127
    %v130 = vsub.s32 32, %v129
    %v131 = vshll.u32 %v122, %v129
    %v132 = vshrl.u32 %v114, %v130
    %v133 = vor.u32 %v131, %v132
    %v134 = vsub.s32 4294967266, %v129
    %v135 = vadd.s32 %v134, 127
    %v136 = vshll.u32 %v135, 23
    %v137 = vor.u32 4788187, %v136
    %v138 = vand.u32 2147483647, %v137
    %v140 = vcvt.s32.f32 %v133
    %v141 = vmul.f32 %v140, %v138
    %v142 = vxor.u32 %v141, 2147483648
    %v143 = vsel %vm60, %v142, %v141
    %v144 = vsub.s32 4, %v120
    %v145 = vsel %vm60, %v144, %v120
    %v146 = vsel %vm59, %v53, %v143
    %v147 = vsel %vm59, 0, %v145
    %v148 = vcosq.f32.pop %v146
    %v149 = vsinq.f32.pop %v146
    %vm150 = vweird.f32 %v53
    %v151 = vadd.s32 %v147, 3
    %v152 = vand.u32 %v151, 3
    %vm153 = vcmp.lt.s32.totalorder %v152, 2
    %vm154 = vcmp.eq.s32.totalorder %v152, 0
    %v155 = vxor.u32 %v149, 2147483648
    %v156 = vsel %vm154, %v148, %v155
    %vm157 = vcmp.eq.s32.totalorder %v152, 2
    %v158 = vxor.u32 %v148, 2147483648
    %v159 = vsel %vm157, %v158, %v149
    %v160 = vsel %vm153, %v156, %v159
    %v161 = vsel %vm150, nan, %v160
    %v162 = vand.u32 2147483647, %v53
    %vm163 = vcmp.le.f32.partialorder %v162, 0.7853982
    %vm164 = vcmp.lt.s32.totalorder %v53, 0
    %v165 = vand.u32 %v53, 2139095040
    %v166 = vshrl.u32 %v165, 23
    %v167 = vsub.s32 %v166, 127
    %v168 = vand.u32 2147483647, %v53
    %v169 = vand.u32 %v168, 8388607
    %v170 = vor.u32 %v169, 8388608
    %v171 = vsub.s32 0, %v170
    %v172 = vadd.s32 %v167, 1
    %vm173 = vcmp.gt.s32.totalorder %v172, 0
    %v174 = vsel %vm173, %v172, 0
    %v175 = vshrl.u32 %v174, 5
    %v176 = vand.u32 %v174, 31
    %v177 = vsub.s32 32, %v176
    %v178 = vshrl.u32 683565275, %v177
    %v179 = vshll.u32 683565275, %v176
    %v180 = vshrl.u32 2475754826, %v177
    %v181 = vor.u32 %v179, %v180
    %v182 = vshll.u32 2475754826, %v176
    %v183 = vshrl.u32 2131351028, %v177
    %v184 = vor.u32 %v182, %v183
    %v185 = vshll.u32 2131351028, %v176
    %v186 = vshrl.u32 2102212464, %v177
    %v187 = vor.u32 %v185, %v186
    %v188 = vshll.u32 2102212464, %v176
    %v189 = vshrl.u32 920167782, %v177
    %v190 = vor.u32 %v188, %v189
    %v191 = vshll.u32 920167782, %v176
    %v192 = vshrl.u32 1326507024, %v177
    %v193 = vor.u32 %v191, %v192
    %vm194 = vcmp.lt.s32.totalorder %v175, 1
    %vm195 = vcmp.lt.s32.totalorder %v175, 2
    %vm196 = vcmp.lt.s32.totalorder %v175, 3
    %vm197 = vcmp.lt.s32.totalorder %v175, 4
    %v198 = vsel %vm194, %v178, %v181
    %v199 = vsel %vm197, %v187, 2102212464
    %v200 = vsel %vm196, %v184, %v199
    %v201 = vsel %vm195, %v198, %v200
    %v202 = vsel %vm194, %v181, %v184
    %v203 = vsel %vm197, %v190, 920167782
    %v204 = vsel %vm196, %v187, %v203
    %v205 = vsel %vm195, %v202, %v204
    %v206 = vsel %vm194, %v184, %v187
    %v207 = vsel %vm197, %v193, 1326507024
    %v208 = vsel %vm196, %v190, %v207
    %v209 = vsel %vm195, %v206, %v208
    %v210 = vshll.u32 %v170, 8
    %v211 = vmul.u32.u64.compose %v210, %v209
    %v212 = vextract.low.u32 %v211
    %v213 = vextract.high.u32 %v211
    %v214 = vmul.u32.u64.compose %v210, %v205
    %v215 = vextract.low.u32 %v214
    %v216 = vextract.high.u32 %v214
    %v217 = vmul.u32 %v210, %v201
    %v218 = vadd.s32 %v213, %v215
    %vm219 = vc.u32 %v213, %v215
    %v220 = vadd.s32 %v216, 1
    %v221 = vsel %vm219, %v220, %v216
    %v222 = vadd.s32 %v217, %v221
    %v223 = vadd.s32 %v222, 536870912
    %v224 = vshrl.u32 %v223, 30
    %v225 = vshll.u32 %v224, 30
    %v226 = vsub.s32 %v222, %v225
    %vm227 = vcmp.lt.s32.totalorder %v226, 0
    %v228 = vsub.s32 0, %v226
    %v229 = vsel %vm227, %v228, %v226
    %v230 = vclz %v229
    %v231 = vsub.s32 %v230, 2
    %vm232 = vcmp.gt.s32.totalorder 0, %v231
    %v233 = vsel %vm232, 0, %v231
    %v234 = vsub.s32 32, %v233
    %v235 = vshll.u32 %v226, %v233
    %v236 = vshrl.u32 %v218, %v234
    %v237 = vor.u32 %v235, %v236
    %v238 = vsub.s32 4294967266, %v233
    %v239 = vadd.s32 %v238, 127
    %v240 = vshll.u32 %v239, 23
    %v241 = vor.u32 4788187, %v240
    %v242 = vand.u32 2147483647, %v241
    %v244 = vcvt.s32.f32 %v237
    %v245 = vmul.f32 %v244, %v242
    %v246 = vxor.u32 %v245, 2147483648
    %v247 = vsel %vm164, %v246, %v245
    %v248 = vsub.s32 4, %v224
    %v249 = vsel %vm164, %v248, %v224
    %v250 = vsel %vm163, %v53, %v247
    %v251 = vsel %vm163, 0, %v249
    %v252 = vcosq.f32.pop %v250
    %v253 = vsinq.f32.pop %v250
    %vm254 = vweird.f32 %v53
    %v255 = vand.u32 %v251, 3
    %vm256 = vcmp.lt.s32.totalorder %v255, 2
    %vm257 = vcmp.eq.s32.totalorder %v255, 0
    %v258 = vxor.u32 %v253, 2147483648
    %v259 = vsel %vm257, %v252, %v258
    %vm260 = vcmp.eq.s32.totalorder %v255, 2
    %v261 = vxor.u32 %v252, 2147483648
    %v262 = vsel %vm260, %v261, %v253
    %v263 = vsel %vm256, %v259, %v262
    %v264 = vsel %vm254, nan, %v263
    %v265 = vsel %vm57, %v161, %v264
    %266 = vst [vmem:[#allocation2] sm:$0xff] %v265
    // Predicated region
    $region10: #{tpu_custom_call.1} parent=1 // pred_check
      _
    $region11: #{tpu_custom_call.1} parent=1 // pred_check_branch
      %268 = sbr.rel (0) target = $region13
    $region12: #{tpu_custom_call.1} parent=1 // pred_region
      %s270 = ssub.s32 128, 128
      %271 = vsyncadd [#allocation3], %s270
      %s273 = sshll.u32 [#allocation2], 4
      %s274 = int_to_ptr.vmem [resolvable:$true] %s273
      %276 = dma.vmem_to_hbm [thread:$0]  %s274, 128, %s2, [#allocation3]
    $region13: #{tpu_custom_call.1} parent=1 // pred_fallthru
      _
    // Predicated region
    $region14: #{tpu_custom_call.1} parent=1 // pred_check
      _
    $region15: #{tpu_custom_call.1} parent=1 // pred_check_branch
      %278 = sbr.rel (0) target = $region17
    $region16: #{tpu_custom_call.1} parent=1 // pred_region
      %279 = dma.done [#allocation3], 128
    $region17: #{tpu_custom_call.1} parent=1 // pred_fallthru
      _
    %280 = vsyncpa [#allocation3], 1

</llo_original>
